<compile_context>
chip_gen: v5e
topology: v5e:2x2
jax: 0.10.0
libtpu: 0.0.40
codegen_flags: <defaults>
</compile_context>

<pallas_src>
import jax
import jax.numpy as jnp
from jax.experimental import pallas as pl
from jax.experimental.pallas import tpu as pltpu


def _round_up(x, m):
    return ((x + m - 1) // m) * m


def _patch_embed_kernel(x_ref, w_ref, b_ref, o_ref):
    # x_ref: (tm, K)  bf16 flattened patches (one M tile)
    # w_ref: (K, Dp)  bf16 projection weight (grid-invariant -> resident)
    # b_ref: (1, Dp)  f32 bias (grid-invariant)
    # o_ref: (tm, Dp) projected patches
    acc = jnp.dot(x_ref[...], w_ref[...], preferred_element_type=jnp.float32)
    o_ref[...] = (acc + b_ref[...]).astype(o_ref.dtype)


def prepare_proj_params(weight, bias):
    """Hoisted, once-per-model parameter prep.

    weight: (D, C, P, P) Conv2d-shaped -> (K, Dp) bf16, K = C*P*P,
    Dp = round_up(D, 128) so output stores are lane-dense (no-op at D=768).
    bias: (D,) -> (1, Dp) f32.
    Returns (w_mat, b_mat, D).
    """
    D, C, P, P2 = weight.shape
    assert P == P2, "square patches expected"
    K = C * P * P
    Dp = _round_up(D, 128)
    w_mat = weight.reshape(D, K).T.astype(jnp.bfloat16)          # (K, D)
    b_mat = bias.astype(jnp.float32).reshape(1, D)
    if Dp != D:
        w_mat = jnp.pad(w_mat, ((0, 0), (0, Dp - D)))
        b_mat = jnp.pad(b_mat, ((0, 0), (0, Dp - D)))
    return w_mat, b_mat, D


def motion_patch_embed(x, w_mat, b_mat, embed_dim, patch_size, *,
                       tile_m=1024, out_dtype=None):
    """x: (B, C, H, W) NCHW.  w_mat/b_mat from prepare_proj_params.
    Returns (B, num_patches, embed_dim), matching proj(x).flatten(2).transpose(1, 2)."""
    B, C, H, W = x.shape
    P = patch_size
    D = embed_dim
    K, Dp = w_mat.shape
    assert K == C * P * P, "weight does not match (C, P)"
    assert H % P == 0 and W % P == 0, "H and W must be divisible by patch_size"
    nH, nW = H // P, W // P
    num_patches = nH * nW
    M = B * num_patches
    out_dtype = x.dtype if out_dtype is None else out_dtype

    # --- im2col: (B, C, H, W) -> (M, K) with K in (c, p, q) order to match the
    # Conv2d weight layout.  This is a single fused transpose+convert pass in
    # XLA (no pad); the kernel then reads the bf16 buffer with contiguous DMAs.
    patches = x.reshape(B, C, nH, P, nW, P)
    patches = jnp.transpose(patches, (0, 2, 4, 1, 3, 5))
    patches = patches.reshape(M, K).astype(jnp.bfloat16)

    # --- M tiling: aim for >= 2 grid steps when M is large enough (lets the
    # "parallel" axis shard across v7x's two TensorCores) with 256-aligned
    # tiles; tiny M collapses to a single small (sublane-aligned) tile.
    if M <= 2 * tile_m:
        tm = min(max(256, _round_up(pl.cdiv(M, 2), 256)), _round_up(M, 8))
    else:
        tm = tile_m
    grid_m = pl.cdiv(M, tm)   # ragged last tile is masked by Mosaic

    out_bytes = jnp.dtype(out_dtype).itemsize
    cost = pl.CostEstimate(
        flops=2 * M * K * Dp,
        transcendentals=0,
        bytes_accessed=M * K * 2 + K * Dp * 2 + Dp * 4 + M * Dp * out_bytes,
    )

    out = pl.pallas_call(
        _patch_embed_kernel,
        out_shape=jax.ShapeDtypeStruct((M, Dp), out_dtype),
        grid_spec=pltpu.PrefetchScalarGridSpec(
            num_scalar_prefetch=0,
            grid=(grid_m,),
            in_specs=[
                pl.BlockSpec((tm, K), lambda i: (i, 0)),   # patches: tiled over M
                pl.BlockSpec((K, Dp), lambda i: (0, 0)),   # weight: grid-invariant
                pl.BlockSpec((1, Dp), lambda i: (0, 0)),   # bias:   grid-invariant
            ],
            out_specs=pl.BlockSpec((tm, Dp), lambda i: (i, 0)),
        ),
        compiler_params=pltpu.CompilerParams(
            dimension_semantics=("parallel",),
            # ~12 MiB live at tm=1024, K=D=768; 48 MiB keeps headroom and stays
            # under v7x's 64 MiB physical VMEM (v5e/v6e have 128 MiB).
            vmem_limit_bytes=48 * 1024 * 1024,
        ),
        cost_estimate=cost,
    )(patches, w_mat, b_mat)

    if Dp != D:
        out = out[:, :D]       # strip lane padding (no-op for the real D=768)
    return out.reshape(B, num_patches, D)


if __name__ == "__main__":
    # Small shapes consistent with the module: img_size=16, patch_size=4,
    # in_chans=4, embed_dim=32 -> num_patches = 16 per image.
    B, C, H, W = 2, 4, 16, 16
    P = 4
    D = 32

    key = jax.random.PRNGKey(0)
    kx, kw, kb = jax.random.split(key, 3)
    x = jax.random.normal(kx, (B, C, H, W), dtype=jnp.float32)
    # Conv2d-shaped parameters: weight (D, C, P, P), bias (D,).
    weight = jax.random.normal(kw, (D, C, P, P), dtype=jnp.float32) * 0.02
    bias = jax.random.normal(kb, (D,), dtype=jnp.float32) * 0.02

    # Parameter prep is hoisted (done once, not per forward call).
    w_mat, b_mat, _ = prepare_proj_params(weight, bias)

    out = motion_patch_embed(x, w_mat, b_mat, D, P)
    out = jax.block_until_ready(out)

    # Reference: plain-JAX conv with kernel_size=stride=patch_size (f32).
    ref = jax.lax.conv_general_dilated(
        x, weight, window_strides=(P, P), padding="VALID",
        dimension_numbers=("NCHW", "OIHW", "NCHW"))
    ref = ref + bias[None, :, None, None]
    ref = ref.reshape(B, D, -1).transpose(0, 2, 1)

    assert out.shape == (B, (H // P) * (W // P), D)
    # bf16 operands (f32 accumulation) vs the f32 reference -> loosened tolerance.
    assert jnp.allclose(out, ref, atol=2e-2, rtol=2e-2), \
        float(jnp.max(jnp.abs(out - ref)))

    print("KERNEL_OK")
</pallas_src>

<mosaic_0001>
module attributes {stable_mosaic.version = 11 : i64} {
  func.func @_patch_embed_kernel(%arg0: i32, %arg1: memref<32x64xbf16, #tpu.memory_space<vmem>>, %arg2: memref<64x128xbf16, #tpu.memory_space<vmem>>, %arg3: memref<1x128xf32, #tpu.memory_space<vmem>>, %arg4: memref<32x128xf32, #tpu.memory_space<vmem>>) attributes {dimension_semantics = [#tpu.dimension_semantics<parallel>], iteration_bounds = array<i64: 1>, scalar_prefetch = 0 : i64, scratch_operands = 0 : i64, tpu.core_type = #tpu.core_type<tc>, window_params = [{transform_indices = @transform_0, window_bounds = array<i64: 32, 64>}, {pipeline_mode = #tpu.pipeline_mode<synchronous>, transform_indices = @transform_1, window_bounds = array<i64: 64, 128>}, {pipeline_mode = #tpu.pipeline_mode<synchronous>, transform_indices = @transform_2, window_bounds = array<i64: 1, 128>}, {transform_indices = @transform_3, window_bounds = array<i64: 32, 128>}]} {
    %c0 = arith.constant 0 : index
    %c0_0 = arith.constant 0 : index
    %0 = vector.load %arg1[%c0, %c0_0] : memref<32x64xbf16, #tpu.memory_space<vmem>>, vector<32x64xbf16>
    %c0_1 = arith.constant 0 : index
    %c0_2 = arith.constant 0 : index
    %1 = vector.load %arg2[%c0_1, %c0_2] : memref<64x128xbf16, #tpu.memory_space<vmem>>, vector<64x128xbf16>
    %cst = arith.constant dense<0.000000e+00> : vector<32x128xf32>
    %2 = tpu.matmul %0, %1, %cst {dimension_numbers = #tpu.dot_dimension_numbers<[1], [0], [0], [1], [0, 0, 1, 1], [], []>} : vector<32x64xbf16>, vector<64x128xbf16>, vector<32x128xf32> -> vector<32x128xf32>
    %c0_3 = arith.constant 0 : index
    %c0_4 = arith.constant 0 : index
    %3 = vector.load %arg3[%c0_3, %c0_4] : memref<1x128xf32, #tpu.memory_space<vmem>>, vector<1x128xf32>
    %4 = vector.broadcast %3 : vector<1x128xf32> to vector<32x128xf32>
    %5 = arith.addf %2, %4 : vector<32x128xf32>
    %c0_5 = arith.constant 0 : index
    %c0_6 = arith.constant 0 : index
    %6 = vector.load %arg4[%c0_5, %c0_6] : memref<32x128xf32, #tpu.memory_space<vmem>>, vector<32x128xf32>
    tpu.vector_store %arg4[%c0_5, %c0_6], %5 {strides = array<i32>} : memref<32x128xf32, #tpu.memory_space<vmem>>, vector<32x128xf32>,
    return
  }
  func.func @transform_0(%arg0: i32) -> (i32, i32) {
    %c0_i32 = arith.constant 0 : i32
    %c0_i32_0 = arith.constant 0 : i32
    return %arg0, %c0_i32 : i32, i32
  }
  func.func @transform_1(%arg0: i32) -> (i32, i32) {
    %c0_i32 = arith.constant 0 : i32
    %c0_i32_0 = arith.constant 0 : i32
    %c0_i32_1 = arith.constant 0 : i32
    return %c0_i32, %c0_i32_0 : i32, i32
  }
  func.func @transform_2(%arg0: i32) -> (i32, i32) {
    %c0_i32 = arith.constant 0 : i32
    %c0_i32_0 = arith.constant 0 : i32
    %c0_i32_1 = arith.constant 0 : i32
    return %c0_i32, %c0_i32_0 : i32, i32
  }
  func.func @transform_3(%arg0: i32) -> (i32, i32) {
    %c0_i32 = arith.constant 0 : i32
    %c0_i32_0 = arith.constant 0 : i32
    return %arg0, %c0_i32 : i32, i32
  }
}

</mosaic_0001>

<llo_original>
// kernel: tpu_custom_call.1
$region0: #{tpu_custom_call.1}
  #allocation0 [shape = 'u32[]', space=smem, size = 0x4, offset = 0x4, fixed_abs, tag = 'smem constant byte address 0x4 - core index']
  #allocation1 [shape = 'u32[72,128]{1,0:T(1,128)}', space=vmem, size = 0x9000, scoped, tag = 'internal scratch']
  %s0 = inlined_call_operand.hbm [shape: bf16[32,64], index: 0, kind: input, shape index: {}]
  %s1 = inlined_call_operand.hbm [shape: bf16[64,128], index: 1, kind: input, shape index: {}]
  %s2 = inlined_call_operand.vmem [shape: f32[1,128], index: 2, kind: input, shape index: {}]
  %s3 = inlined_call_operand.hbm [shape: f32[32,128], index: 3, kind: output, shape index: {}]
  %s4 = sld [smem:[#allocation0]]
  $region30: #{tpu_custom_call.1} parent=0
    _
  %s6 = ssub.s32 1, %s4
  %s7 = scalar_select 0, %s6, %s4
  $region1: #{tpu_custom_call.1} parent=0
    #allocation2 [shape = 'u8[8192]{0}', space=vmem, size = 0x2000, scoped, tag = 'input window, operand 0, single buffered']
    #allocation3 [shape = 's32[1]{0}', space=sflag, size = 0x4, scoped, tag = 'scoped memory for tpu_custom_call.1']
    #allocation4 [shape = 's32[1]{0}', space=sflag, size = 0x4, scoped, tag = 'scoped memory for tpu_custom_call.1']
    #allocation5 [shape = 'u8[16384]{0}', space=vmem, size = 0x4000, scoped, tag = 'input window, operand 1, single buffered']
    #allocation6 [shape = 's32[1]{0}', space=sflag, size = 0x4, scoped, tag = 'scoped memory for tpu_custom_call.1']
    #allocation7 [shape = 'u8[16384]{0}', space=vmem, size = 0x4000, scoped, tag = 'output window, operand 0, single buffered']
    %8 = vsyncpa [#allocation3], 0
    %9 = vsyncpa [#allocation6], 0
    %10 = vsyncpa [#allocation4], 0
    // Predicated region
    $region2: #{tpu_custom_call.1} parent=1 // pred_check
      _
    $region3: #{tpu_custom_call.1} parent=1 // pred_check_branch
      %12 = sbr.rel (0) target = $region5
    $region4: #{tpu_custom_call.1} parent=1 // pred_region
      %14 = vsyncadd [#allocation3], 0
      %s15 = sshll.u32 %s0, 4
      %s16 = int_to_ptr.hbm [resolvable:$true] %s15
      %s17 = sshll.u32 [#allocation2], 4
      %s18 = int_to_ptr.vmem [resolvable:$true] %s17
      %23 = dma.hbm_to_vmem [thread:$0]  %s16, 256, %s18, [#allocation3], 64, 64, 4
    $region5: #{tpu_custom_call.1} parent=1 // pred_fallthru
      _
    // Predicated region
    $region6: #{tpu_custom_call.1} parent=1 // pred_check
      _
    $region7: #{tpu_custom_call.1} parent=1 // pred_check_branch
      %25 = sbr.rel (0) target = $region9
    $region8: #{tpu_custom_call.1} parent=1 // pred_region
      %27 = vsyncadd [#allocation6], 0
      %s28 = sshll.u32 %s1, 4
      %s29 = int_to_ptr.hbm [resolvable:$true] %s28
      %s30 = sshll.u32 [#allocation5], 4
      %s31 = int_to_ptr.vmem [resolvable:$true] %s30
      %36 = dma.hbm_to_vmem [thread:$0]  %s29, 512, %s31, [#allocation6], 64, 64, 4
    $region9: #{tpu_custom_call.1} parent=1 // pred_fallthru
      _
    // Predicated region
    $region10: #{tpu_custom_call.1} parent=1 // pred_check
      _
    $region11: #{tpu_custom_call.1} parent=1 // pred_check_branch
      %38 = sbr.rel (0) target = $region13
    $region12: #{tpu_custom_call.1} parent=1 // pred_region
      _
    $region13: #{tpu_custom_call.1} parent=1 // pred_fallthru
      _
    // Predicated region
    $region14: #{tpu_custom_call.1} parent=1 // pred_check
      _
    $region15: #{tpu_custom_call.1} parent=1 // pred_check_branch
      %40 = sbr.rel (0) target = $region17
    $region16: #{tpu_custom_call.1} parent=1 // pred_region
      %42 = dma.done [#allocation3], 256
    $region17: #{tpu_custom_call.1} parent=1 // pred_fallthru
      _
    // Predicated region
    $region18: #{tpu_custom_call.1} parent=1 // pred_check
      _
    $region19: #{tpu_custom_call.1} parent=1 // pred_check_branch
      %44 = sbr.rel (0) target = $region21
    $region20: #{tpu_custom_call.1} parent=1 // pred_region
      %46 = dma.done [#allocation6], 512
    $region21: #{tpu_custom_call.1} parent=1 // pred_fallthru
      _
    %v48 = vld [vmem:[#allocation2] sm:$0xf]
    %v49 = vld [vmem:[#allocation2 + $0x4] sm:$0xf]
    %v50 = vld [vmem:[#allocation2 + $0x8] sm:$0xf]
    %v51 = vld [vmem:[#allocation2 + $0xc] sm:$0xf]
    %v52 = vld [vmem:[#allocation5] sm:$0xf]
    %v53 = vld [vmem:[#allocation5 + $0x4] sm:$0xf]
    %v54 = vld [vmem:[#allocation5 + $0x8] sm:$0xf]
    %v55 = vld [vmem:[#allocation5 + $0xc] sm:$0xf]
    %v56 = vld [vmem:[#allocation5 + $0x10] sm:$0xf]
    %v57 = vld [vmem:[#allocation5 + $0x14] sm:$0xf]
    %v58 = vld [vmem:[#allocation5 + $0x18] sm:$0xf]
    %v59 = vld [vmem:[#allocation5 + $0x1c] sm:$0xf]
    %v60 = vld [vmem:[%s2] sm:$0x1]
    %v62 = vperm.slane %v60, 0
    %v68 = vunpack.c.l.b16 %v48
    %v69 = vunpack.c.l.b16 %v49
    %v70 = vunpack.c.l.b16 %v50
    %v71 = vunpack.c.l.b16 %v51
    %v72 = vpack.c.b16 %v69, %v68
    %v73 = vpack.c.b16 %v71, %v70
    %v82 = vunpack.c.l.b16 %v52
    %v83 = vunpack.c.l.b16 %v53
    %v84 = vunpack.c.l.b16 %v54
    %v85 = vunpack.c.l.b16 %v55
    %v86 = vunpack.c.l.b16 %v56
    %v87 = vunpack.c.l.b16 %v57
    %v88 = vunpack.c.l.b16 %v58
    %v89 = vunpack.c.l.b16 %v59
    %v90 = vpack.c.b16 %v83, %v82
    %v91 = vpack.c.b16 %v85, %v84
    %v92 = vpack.c.b16 %v87, %v86
    %v93 = vpack.c.b16 %v89, %v88
    %vm98 = vcmask 523264
    %v100 = vsel %vm98, %v72, 0
    %v103 = vsel %vm98, %v73, 0
    %105 = vmatpush.bf16.msra.mxu0 0
    %106 = vmatpush.bf16.msra.mxu0 0
    %107 = vmatpush.bf16.msra.mxu0 0
    %108 = vmatpush.bf16.msra.mxu0 0
    %109 = vmatpush.bf16.msra.mxu0 %v93
    %110 = vmatpush.bf16.msra.mxu0 %v92
    %111 = vmatpush.bf16.msra.mxu0 %v91
    %112 = vmatpush.bf16.msra.mxu0 %v90
    %113 = vmatmul.bf16.gmra.mxu0 %v100
    %v114 = vpop.f32.mrf.mxu0
    %v115 = vadd.f32 %v62, %v114
    %v116 = vpop.f32.mrf.mxu0
    %v117 = vadd.f32 %v62, %v116
    %118 = vmatmul.bf16.gmra.mxu0 %v103
    %v119 = vpop.f32.mrf.mxu0
    %v120 = vadd.f32 %v62, %v119
    %v121 = vpop.f32.mrf.mxu0
    %v122 = vadd.f32 %v62, %v121
    %123 = vdwg.mxu0
    %124 = vst [vmem:[#allocation7] sm:$0xff] %v115
    %125 = vst [vmem:[#allocation7 + $0x8] sm:$0xff] %v117
    %126 = vst [vmem:[#allocation7 + $0x10] sm:$0xff] %v120
    %127 = vst [vmem:[#allocation7 + $0x18] sm:$0xff] %v122
    // Predicated region
    $region22: #{tpu_custom_call.1} parent=1 // pred_check
      _
    $region23: #{tpu_custom_call.1} parent=1 // pred_check_branch
      %129 = sbr.rel (0) target = $region25
    $region24: #{tpu_custom_call.1} parent=1 // pred_region
      %131 = vsyncadd [#allocation4], 0
      %s132 = sshll.u32 [#allocation7], 4
      %s133 = int_to_ptr.vmem [resolvable:$true] %s132
      %s134 = sshll.u32 %s3, 4
      %s135 = int_to_ptr.hbm [resolvable:$true] %s134
      %140 = dma.vmem_to_hbm [thread:$0]  %s133, 512, %s135, [#allocation4], 128, 128, 8
    $region25: #{tpu_custom_call.1} parent=1 // pred_fallthru
      _
    // Predicated region
    $region26: #{tpu_custom_call.1} parent=1 // pred_check
      _
    $region27: #{tpu_custom_call.1} parent=1 // pred_check_branch
      %142 = sbr.rel (0) target = $region29
    $region28: #{tpu_custom_call.1} parent=1 // pred_region
      %144 = dma.done [#allocation4], 512
    $region29: #{tpu_custom_call.1} parent=1 // pred_fallthru
      _
    %145 = vsyncpa [#allocation3], 1
    %146 = vsyncpa [#allocation6], 1
    %147 = vsyncpa [#allocation4], 1

</llo_original>
